<compile_context>
chip_gen: v6e
topology: v6e:2x2x1
jax: 0.10.0
libtpu: 0.0.40
codegen_flags: <defaults>
</compile_context>

<pallas_src>
import warnings

import jax
import jax.numpy as jnp
from jax.experimental import pallas as pl
from jax.experimental.pallas import tpu as pltpu


def _patch_applier_kernel(img_ref, adv_ref, out_ref):
    """img_ref/out_ref: (B, st, 128) tile; adv_ref: (B, N, st, 128) tile."""
    acc = img_ref[...]
    n_patches = adv_ref.shape[1]              # static (block shape)
    for n in range(n_patches):                # small static unroll over patches
        adv = adv_ref[:, n]                   # dense (B, st, 128) read: N is a major axis
        # Nonzero patch pixels overwrite the (accumulated) image.
        acc = jnp.where(adv == 0, acc, adv)
    out_ref[...] = acc.astype(out_ref.dtype)


def _choose_sublane_tile(rows, B, N, itemsize, vmem_budget_bytes):
    """Pick the sublane tile `st` (multiple of 8) for (B, st, 128) blocks."""
    # Pipeline VMEM per sublane row of a tile:
    #   img (x2 buffers) + out (x2 buffers) + adv (x2 buffers, N patches folded in).
    bytes_per_row = 2 * itemsize * 128 * B * (2 + N)
    st_budget = max(8, (vmem_budget_bytes // bytes_per_row) // 8 * 8)
    # Keep >= ~8 grid steps when the image is big enough: deep pipeline and
    # work for both of v7x's TensorCores.  DMA efficiency is flat past ~512
    # lanes, so capping the tile costs nothing.
    target_steps = 8
    st_steps = max(8, (rows // target_steps) // 8 * 8)
    st = min(st_budget, st_steps)
    # Prefer an even step count (balances v7x's 2 TCs) if it costs < 2x tile.
    if rows > st and pl.cdiv(rows, st) % 2 == 1:
        for cand in range(st, max(8, st // 2) - 1, -8):
            if pl.cdiv(rows, cand) % 2 == 0:
                st = cand
                break
    return st, bytes_per_row


def patch_applier(img_batch, adv_batch, *, vmem_budget_bytes=12 * 1024 * 1024,
                  interpret=False):
    """img_batch: (B, C, H, W); adv_batch: (B, N, C, H, W) -> (B, C, H, W)."""
    B, C, H, W = img_batch.shape
    Ba, N, Ca, Ha, Wa = adv_batch.shape
    assert (Ba, Ca, Ha, Wa) == (B, C, H, W), "adv_batch must be (B, N, C, H, W)"

    dtype = img_batch.dtype
    adv_batch = adv_batch.astype(dtype)
    itemsize = jnp.dtype(dtype).itemsize

    CHW = C * H * W
    rows = pl.cdiv(CHW, 128)

    st, bytes_per_row = _choose_sublane_tile(rows, B, N, itemsize,
                                             vmem_budget_bytes)
    rows_pad = pl.cdiv(rows, st) * st
    CHW_pad = rows_pad * 128
    num_steps = rows_pad // st

    # Contiguous reshapes only (no transpose of adv).  Zero-pad the pixel axis
    # up to rows_pad*128: adv zeros are pass-through and the padded image tail
    # is sliced off, so padding is semantically free.
    img2d = img_batch.reshape(B, CHW)
    adv3d = adv_batch.reshape(B, N, CHW)
    if CHW_pad != CHW:
        pad = CHW_pad - CHW
        img2d = jnp.pad(img2d, ((0, 0), (0, pad)))
        adv3d = jnp.pad(adv3d, ((0, 0), (0, 0), (0, pad)))
    img3 = img2d.reshape(B, rows_pad, 128)
    adv4 = adv3d.reshape(B, N, rows_pad, 128)

    # Explicit, generation-safe VMEM limit derived from the actual requirement.
    required = bytes_per_row * st
    vmem_limit = int(max(required * 3 // 2, 16 * 1024 * 1024))
    try:
        phys = pltpu.get_tpu_info().vmem_capacity_bytes
        vmem_limit = min(vmem_limit, phys // 2)       # headroom on v7x (64 MiB/TC)
    except Exception:
        vmem_limit = min(vmem_limit, 48 * 1024 * 1024)
    vmem_limit = max(vmem_limit, required + (2 << 20))  # never clamp below need

    # Triple-buffer just the adv stream when there are many short steps: adv
    # carries N/(N+2) of the traffic and one extra adv tile is cheap.
    adv_spec_kwargs = {}
    extra_adv_tile = itemsize * 128 * st * B * N
    if num_steps >= 8 and required + extra_adv_tile <= vmem_budget_bytes * 3 // 2:
        adv_spec_kwargs["pipeline_mode"] = pl.Buffered(3)

    out3 = pl.pallas_call(
        _patch_applier_kernel,
        out_shape=jax.ShapeDtypeStruct((B, rows_pad, 128), dtype),
        grid=(num_steps,),
        in_specs=[
            # (B, st, 128) image tile: pixel axis on sublane/lane, B major.
            pl.BlockSpec((B, st, 128), lambda i: (0, i, 0)),
            # All N patches for the same spatial window; N folded into the
            # block on a major axis so the grid stays 1-D and fully parallel.
            pl.BlockSpec((B, N, st, 128), lambda i: (0, 0, i, 0),
                         **adv_spec_kwargs),
        ],
        out_specs=pl.BlockSpec((B, st, 128), lambda i: (0, i, 0)),
        compiler_params=pltpu.CompilerParams(
            dimension_semantics=("parallel",),   # shards across v7x's 2 TCs
            vmem_limit_bytes=vmem_limit,
        ),
        # Output overwrites the image buffer in place (only "real" if the
        # caller donates img_batch -- see patch_applier_donating below).
        input_output_aliases={0: 0},
        interpret=interpret,
    )(img3, adv4)

    out2d = out3.reshape(B, CHW_pad)
    if CHW_pad != CHW:
        out2d = out2d[:, :CHW]
    return out2d.reshape(B, C, H, W)


# Zero-copy entry point: donating img_batch lets XLA honor the in-kernel alias
# instead of inserting a defensive copy.  Callers must not reuse img_batch.
patch_applier_donating = jax.jit(
    lambda img_batch, adv_batch: patch_applier(img_batch, adv_batch),
    donate_argnums=(0,),
)


def patch_applier_ref(img_batch, adv_batch):
    """Pure-JAX reference mirroring the PyTorch loop."""
    out = img_batch
    for n in range(adv_batch.shape[1]):
        adv = adv_batch[:, n]
        out = jnp.where(adv == 0, out, adv)
    return out


def _make_inputs(key, B, N, C, H, W):
    k_img, k_adv, k_mask = jax.random.split(key, 3)
    img_batch = jax.random.uniform(k_img, (B, C, H, W), dtype=jnp.float32)
    # Adversarial patches: exactly zero outside the patch region (pass-through),
    # nonzero values inside.
    adv_vals = jax.random.uniform(
        k_adv, (B, N, C, H, W), dtype=jnp.float32, minval=0.1, maxval=1.0
    )
    mask = (jax.random.uniform(k_mask, (B, N, 1, H, W)) > 0.5).astype(jnp.float32)
    return img_batch, adv_vals * mask  # exact zeros where mask == 0


if __name__ == "__main__":
    key = jax.random.PRNGKey(0)
    k1, k2 = jax.random.split(key)

    # --- Case 1: 128-aligned pixel count, donated image (in-place output). ---
    B, N, C, H, W = 2, 3, 4, 16, 16
    img_batch, adv_batch = _make_inputs(k1, B, N, C, H, W)
    ref = jax.block_until_ready(patch_applier_ref(img_batch, adv_batch))

    # Harmless if XLA cannot alias through the reshape chain on this backend.
    warnings.filterwarnings(
        "ignore", message="Some donated buffers were not usable")
    out = patch_applier_donating(img_batch, adv_batch)   # img_batch is donated
    out = jax.block_until_ready(out)

    assert out.shape == (B, C, H, W)
    assert out.dtype == ref.dtype
    assert jnp.array_equal(out, ref), "Pallas output mismatch vs reference (case 1)"

    # --- Case 2: non-128-multiple C*H*W exercises the zero-padding path. ---
    B2, N2, C2, H2, W2 = 2, 2, 3, 13, 13
    img2, adv2 = _make_inputs(k2, B2, N2, C2, H2, W2)
    ref2 = jax.block_until_ready(patch_applier_ref(img2, adv2))
    out2 = jax.block_until_ready(patch_applier(img2, adv2))
    assert out2.shape == (B2, C2, H2, W2)
    assert jnp.array_equal(out2, ref2), "Pallas output mismatch vs reference (case 2)"

    print("KERNEL_OK")
</pallas_src>

<mosaic_0001>
module attributes {stable_mosaic.version = 11 : i64} {
  func.func @_patch_applier_kernel(%arg0: i32, %arg1: memref<2x8x128xf32, #tpu.memory_space<vmem>>, %arg2: memref<2x3x8x128xf32, #tpu.memory_space<vmem>>, %arg3: memref<2x8x128xf32, #tpu.memory_space<vmem>>) attributes {dimension_semantics = [#tpu.dimension_semantics<parallel>], iteration_bounds = array<i64: 1>, scalar_prefetch = 0 : i64, scratch_operands = 0 : i64, tpu.core_type = #tpu.core_type<tc>, window_params = [{transform_indices = @transform_0, window_bounds = array<i64: 2, 8, 128>}, {transform_indices = @transform_1, window_bounds = array<i64: 2, 3, 8, 128>}, {transform_indices = @transform_2, window_bounds = array<i64: 2, 8, 128>}]} {
    %c0 = arith.constant 0 : index
    %c0_0 = arith.constant 0 : index
    %c0_1 = arith.constant 0 : index
    %0 = vector.load %arg1[%c0, %c0_0, %c0_1] : memref<2x8x128xf32, #tpu.memory_space<vmem>>, vector<2x8x128xf32>
    %c0_2 = arith.constant 0 : index
    %c0_3 = arith.constant 0 : index
    %c0_4 = arith.constant 0 : index
    %c0_5 = arith.constant 0 : index
    %1 = vector.load %arg2[%c0_2, %c0_3, %c0_4, %c0_5] : memref<2x3x8x128xf32, #tpu.memory_space<vmem>>, vector<2x1x8x128xf32>
    %2 = vector.shape_cast %1 : vector<2x1x8x128xf32> to vector<2x8x128xf32>
    %cst = arith.constant 0.000000e+00 : f32
    %3 = vector.broadcast %cst : f32 to vector<2x8x128xf32>
    %4 = arith.cmpf oeq, %2, %3 : vector<2x8x128xf32>
    %5 = arith.select %4, %0, %2 : vector<2x8x128xi1>, vector<2x8x128xf32>
    %c0_6 = arith.constant 0 : index
    %c1 = arith.constant 1 : index
    %c0_7 = arith.constant 0 : index
    %c0_8 = arith.constant 0 : index
    %6 = vector.load %arg2[%c0_6, %c1, %c0_7, %c0_8] : memref<2x3x8x128xf32, #tpu.memory_space<vmem>>, vector<2x1x8x128xf32>
    %7 = vector.shape_cast %6 : vector<2x1x8x128xf32> to vector<2x8x128xf32>
    %cst_9 = arith.constant 0.000000e+00 : f32
    %8 = vector.broadcast %cst_9 : f32 to vector<2x8x128xf32>
    %9 = arith.cmpf oeq, %7, %8 : vector<2x8x128xf32>
    %10 = arith.select %9, %5, %7 : vector<2x8x128xi1>, vector<2x8x128xf32>
    %c0_10 = arith.constant 0 : index
    %c2 = arith.constant 2 : index
    %c0_11 = arith.constant 0 : index
    %c0_12 = arith.constant 0 : index
    %11 = vector.load %arg2[%c0_10, %c2, %c0_11, %c0_12] : memref<2x3x8x128xf32, #tpu.memory_space<vmem>>, vector<2x1x8x128xf32>
    %12 = vector.shape_cast %11 : vector<2x1x8x128xf32> to vector<2x8x128xf32>
    %cst_13 = arith.constant 0.000000e+00 : f32
    %13 = vector.broadcast %cst_13 : f32 to vector<2x8x128xf32>
    %14 = arith.cmpf oeq, %12, %13 : vector<2x8x128xf32>
    %15 = arith.select %14, %10, %12 : vector<2x8x128xi1>, vector<2x8x128xf32>
    %c0_14 = arith.constant 0 : index
    %c0_15 = arith.constant 0 : index
    %c0_16 = arith.constant 0 : index
    %16 = vector.load %arg3[%c0_14, %c0_15, %c0_16] : memref<2x8x128xf32, #tpu.memory_space<vmem>>, vector<2x8x128xf32>
    tpu.vector_store %arg3[%c0_14, %c0_15, %c0_16], %15 {strides = array<i32>} : memref<2x8x128xf32, #tpu.memory_space<vmem>>, vector<2x8x128xf32>,
    return
  }
  func.func @transform_0(%arg0: i32) -> (i32, i32, i32) {
    %c0_i32 = arith.constant 0 : i32
    %c0_i32_0 = arith.constant 0 : i32
    %c0_i32_1 = arith.constant 0 : i32
    return %c0_i32, %arg0, %c0_i32_0 : i32, i32, i32
  }
  func.func @transform_1(%arg0: i32) -> (i32, i32, i32, i32) {
    %c0_i32 = arith.constant 0 : i32
    %c0_i32_0 = arith.constant 0 : i32
    %c0_i32_1 = arith.constant 0 : i32
    %c0_i32_2 = arith.constant 0 : i32
    return %c0_i32, %c0_i32_0, %arg0, %c0_i32_1 : i32, i32, i32, i32
  }
  func.func @transform_2(%arg0: i32) -> (i32, i32, i32) {
    %c0_i32 = arith.constant 0 : i32
    %c0_i32_0 = arith.constant 0 : i32
    %c0_i32_1 = arith.constant 0 : i32
    return %c0_i32, %arg0, %c0_i32_0 : i32, i32, i32
  }
}

</mosaic_0001>

<llo_original>
// kernel: _lambda_.1
$region0: #{_lambda_.1}
  #allocation0 [shape = 'u32[]', space=smem, size = 0x4, offset = 0x4, fixed_abs, tag = 'smem constant byte address 0x4 - core index']
  #allocation1 [shape = 'u32[144,128]{1,0:T(1,128)}', space=vmem, size = 0x12000, scoped, tag = 'internal scratch']
  %s0 = inlined_call_operand.vmem [shape: f32[2,8,128], index: 0, kind: input, shape index: {}, may-alias: {0,2}]
  %s1 = inlined_call_operand.vmem [shape: f32[2,3,8,128], index: 1, kind: input, shape index: {}]
  %s2 = inlined_call_operand.vmem [shape: f32[2,8,128], index: 2, kind: output, shape index: {}, may-alias: {0,2}]
  %s3 = sld [smem:[#allocation0]]
  $region18: #{_lambda_.1} parent=0
    _
  %s5 = ssub.s32 1, %s3
  %s6 = scalar_select 0, %s5, %s3
  // Predicated region
  $region2: #{_lambda_.1} parent=0 // pred_check
    _
  $region3: #{_lambda_.1} parent=0 // pred_check_branch
    %8 = sbr.rel (0) target = $region5
  $region4: #{_lambda_.1} parent=0 // pred_region
    _
  $region5: #{_lambda_.1} parent=0 // pred_fallthru
    _
  // Predicated region
  $region6: #{_lambda_.1} parent=0 // pred_check
    _
  $region7: #{_lambda_.1} parent=0 // pred_check_branch
    %10 = sbr.rel (0) target = $region9
  $region8: #{_lambda_.1} parent=0 // pred_region
    _
  $region9: #{_lambda_.1} parent=0 // pred_fallthru
    _
  %v11 = vld [vmem:[%s0] sm:$0xff]
  %v12 = vld [vmem:[%s0 + $0x8] sm:$0xff]
  %v13 = vld [vmem:[%s1] sm:$0xff]
  %v14 = vld [vmem:[%s1 + $0x18] sm:$0xff]
  %vm15 = vcmp.eq.f32.partialorder %v13, 0.0
  %vm16 = vcmp.eq.f32.partialorder %v14, 0.0
  %v17 = vsel %vm15, %v11, %v13
  %v18 = vsel %vm16, %v12, %v14
  %s19 = scalar_lea.vmem %s1, 8
  %v20 = vld [vmem:[%s19] sm:$0xff]
  %v21 = vld [vmem:[%s19 + $0x18] sm:$0xff]
  %vm22 = vcmp.eq.f32.partialorder %v20, 0.0
  %vm23 = vcmp.eq.f32.partialorder %v21, 0.0
  %v24 = vsel %vm22, %v17, %v20
  %v25 = vsel %vm23, %v18, %v21
  %s26 = scalar_lea.vmem %s1, 16
  %v27 = vld [vmem:[%s26] sm:$0xff]
  %v28 = vld [vmem:[%s26 + $0x18] sm:$0xff]
  %vm29 = vcmp.eq.f32.partialorder %v27, 0.0
  %vm30 = vcmp.eq.f32.partialorder %v28, 0.0
  %v31 = vsel %vm29, %v24, %v27
  %v32 = vsel %vm30, %v25, %v28
  %33 = vst [vmem:[%s2] sm:$0xff] %v31
  %34 = vst [vmem:[%s2 + $0x8] sm:$0xff] %v32
  // Predicated region
  $region10: #{_lambda_.1} parent=0 // pred_check
    _
  $region11: #{_lambda_.1} parent=0 // pred_check_branch
    %36 = sbr.rel (0) target = $region13
  $region12: #{_lambda_.1} parent=0 // pred_region
    _
  $region13: #{_lambda_.1} parent=0 // pred_fallthru
    _
  // Predicated region
  $region14: #{_lambda_.1} parent=0 // pred_check
    _
  $region15: #{_lambda_.1} parent=0 // pred_check_branch
    %38 = sbr.rel (0) target = $region17
  $region16: #{_lambda_.1} parent=0 // pred_region
    _
  $region17: #{_lambda_.1} parent=0 // pred_fallthru
    _

</llo_original>
